<compile_context>
chip_gen: v6e
topology: v6e:2x2x1
jax: 0.10.0
libtpu: 0.0.40
codegen_flags: <defaults>
</compile_context>

<pallas_src>
import jax
import jax.numpy as jnp
from jax.experimental import pallas as pl
from jax.experimental.pallas import tpu as pltpu

KSIZE = 3
PAD = KSIZE // 2
BN_EPS = 1e-5
LEAKY_SLOPE = 0.01  # nn.LeakyReLU() default


# ---------------------------------------------------------------------------
# Fused kernel: conv-as-GEMM -> BatchNorm (batch stats) -> LeakyReLU
# Entire problem fits in VMEM -> single program, grid=(1,).
# ---------------------------------------------------------------------------
def _fused_conv_bn_lrelu_kernel(w_ref, p_ref, g_ref, b_ref, o_ref):
    # w_ref: [Cout, K9]   flattened conv weights (row-major over kh, kw, cin)
    # p_ref: [K9, M]      transposed im2col patches (M = N*H*W, lane-dense)
    # g_ref: [Cout, 1]    BN gamma (column vector -> broadcasts over lanes)
    # b_ref: [Cout, 1]    BN beta
    # o_ref: [Cout, M]
    y = jnp.dot(w_ref[...], p_ref[...], preferred_element_type=jnp.float32)
    # NOTE: conv bias intentionally omitted — training-mode BN cancels it.

    # BatchNorm2d, training mode: per-channel batch statistics over N*H*W
    # (biased variance), single pass (sum and sum of squares).
    m_inv = jnp.float32(1.0 / y.shape[1])
    s = jnp.sum(y, axis=1, keepdims=True)              # [Cout, 1]
    sq = jnp.sum(y * y, axis=1, keepdims=True)         # [Cout, 1]
    mean = s * m_inv
    var = jnp.maximum(sq * m_inv - mean * mean, 0.0)   # clamp cancellation

    scale = jax.lax.rsqrt(var + BN_EPS) * g_ref[...]   # [Cout, 1]
    shift = b_ref[...] - mean * scale                  # [Cout, 1]
    xn = y * scale + shift
    o_ref[...] = jnp.maximum(xn, LEAKY_SLOPE * xn).astype(o_ref.dtype)


# ---------------------------------------------------------------------------
# Wrapper
# ---------------------------------------------------------------------------
@jax.jit
def conv_module_forward(x_nchw, w_oihw, bias, gamma, beta):
    """Conv(in_ch, ch) forward.  x: [N, Cin, H, W] -> [N, Cout, H, W].

    `bias` is accepted for parity with nn.Conv2d but is unused: with
    training-mode BatchNorm the conv bias has no effect on the output.
    """
    del bias
    N, Cin, H, W = x_nchw.shape
    Cout = w_oihw.shape[0]
    K9 = KSIZE * KSIZE * Cin
    M = N * H * W

    # im2col, transposed: build [K9, M] directly from padded NCHW.
    # (tiny XLA fusion; keeps per-tap strided-slice relayouts out of the kernel)
    x_pad = jnp.pad(x_nchw, ((0, 0), (0, 0), (PAD, PAD), (PAD, PAD)))
    taps = jnp.stack(
        [x_pad[:, :, kh:kh + H, kw:kw + W]
         for kh in range(KSIZE) for kw in range(KSIZE)], axis=0)   # [9,N,Cin,H,W]
    patches_t = jnp.transpose(taps, (0, 2, 1, 3, 4)).reshape(K9, M)  # [K9, M]

    # OIHW -> (cout, kh, kw, cin) -> [Cout, K9]  (matches patches_t row order)
    w_flat = jnp.transpose(w_oihw, (0, 2, 3, 1)).reshape(Cout, K9)
    gamma_col = gamma.reshape(Cout, 1).astype(jnp.float32)
    beta_col = beta.reshape(Cout, 1).astype(jnp.float32)

    cost = pl.CostEstimate(
        flops=2 * Cout * M * K9 + 10 * Cout * M,
        transcendentals=Cout,
        bytes_accessed=4 * (K9 * M + Cout * K9 + 2 * Cout + Cout * M),
    )

    # TODO(synk): for large spatial/channel sizes (v6e/v7x) cast patches/weights
    # to bf16 for the MXU, split M across TensorCores with a two-pass BN
    # (partial sum/sumsq then normalize), and budget tiles against v7x's 64 MiB
    # VMEM; at this size a single f32 program is optimal (launch-latency bound).
    y = pl.pallas_call(
        _fused_conv_bn_lrelu_kernel,
        out_shape=jax.ShapeDtypeStruct((Cout, M), jnp.float32),
        grid_spec=pltpu.PrefetchScalarGridSpec(
            num_scalar_prefetch=0,
            grid=(1,),
            in_specs=[
                pl.BlockSpec((Cout, K9), lambda i: (0, 0)),
                pl.BlockSpec((K9, M), lambda i: (0, 0)),
                pl.BlockSpec((Cout, 1), lambda i: (0, 0)),
                pl.BlockSpec((Cout, 1), lambda i: (0, 0)),
            ],
            out_specs=pl.BlockSpec((Cout, M), lambda i: (0, 0)),
        ),
        compiler_params=pltpu.CompilerParams(
            dimension_semantics=("arbitrary",),
        ),
        cost_estimate=cost,
    )(w_flat, patches_t, gamma_col, beta_col)

    # [Cout, M] -> [Cout, N, H, W] -> NCHW (outer-dims-only transpose)
    return jnp.transpose(y.reshape(Cout, N, H, W), (1, 0, 2, 3))


# ---------------------------------------------------------------------------
# Pure-JAX reference (for correctness check)
# ---------------------------------------------------------------------------
def _reference(x_nchw, w_oihw, bias, gamma, beta):
    y = jax.lax.conv_general_dilated(
        x_nchw, w_oihw,
        window_strides=(1, 1),
        padding=((PAD, PAD), (PAD, PAD)),
        dimension_numbers=("NCHW", "OIHW", "NCHW"),
    ) + bias[None, :, None, None]
    mean = jnp.mean(y, axis=(0, 2, 3), keepdims=True)
    var = jnp.mean((y - mean) ** 2, axis=(0, 2, 3), keepdims=True)
    yn = (y - mean) * jax.lax.rsqrt(var + BN_EPS)
    yn = yn * gamma[None, :, None, None] + beta[None, :, None, None]
    return jnp.where(yn >= 0, yn, LEAKY_SLOPE * yn)


if __name__ == "__main__":
    # small shapes consistent with the module: in_ch=4, ch=32, 16x16 spatial
    N, Cin, H, W = 2, 4, 16, 16
    Cout = 32

    key = jax.random.PRNGKey(0)
    kx, kw, kb = jax.random.split(key, 3)

    x = jax.random.normal(kx, (N, Cin, H, W), dtype=jnp.float32)
    # deterministic parameter init (shapes from nn.Conv2d / nn.BatchNorm2d)
    fan_in = Cin * KSIZE * KSIZE
    bound = 1.0 / (fan_in ** 0.5)
    w = jax.random.uniform(kw, (Cout, Cin, KSIZE, KSIZE),
                           minval=-bound, maxval=bound, dtype=jnp.float32)
    b = jax.random.uniform(kb, (Cout,), minval=-bound, maxval=bound,
                           dtype=jnp.float32)
    gamma = jnp.ones((Cout,), jnp.float32)   # BatchNorm2d default weight
    beta = jnp.zeros((Cout,), jnp.float32)   # BatchNorm2d default bias

    out = conv_module_forward(x, w, b, gamma, beta)
    out = jax.block_until_ready(out)

    ref = _reference(x, w, b, gamma, beta)
    assert out.shape == (N, Cout, H, W)
    assert jnp.allclose(out, ref, rtol=1e-4, atol=1e-4), "mismatch vs reference"

    # TODO(synk): norm='spec' (spectral norm) and dropout branches are not
    # exercised by the default config and are not implemented.  BN running
    # stats are not updated (forward-only).
    print("KERNEL_OK")
</pallas_src>

<mosaic_0001>
module attributes {stable_mosaic.version = 11 : i64} {
  func.func @_fused_conv_bn_lrelu_kernel(%arg0: i32, %arg1: memref<32x36xf32, #tpu.memory_space<vmem>>, %arg2: memref<36x512xf32, #tpu.memory_space<vmem>>, %arg3: memref<32x1xf32, #tpu.memory_space<vmem>>, %arg4: memref<32x1xf32, #tpu.memory_space<vmem>>, %arg5: memref<32x512xf32, #tpu.memory_space<vmem>>) attributes {dimension_semantics = [#tpu.dimension_semantics<arbitrary>], iteration_bounds = array<i64: 1>, scalar_prefetch = 0 : i64, scratch_operands = 0 : i64, tpu.core_type = #tpu.core_type<tc>, window_params = [{pipeline_mode = #tpu.pipeline_mode<synchronous>, transform_indices = @transform_0, window_bounds = array<i64: 32, 36>}, {pipeline_mode = #tpu.pipeline_mode<synchronous>, transform_indices = @transform_1, window_bounds = array<i64: 36, 512>}, {pipeline_mode = #tpu.pipeline_mode<synchronous>, transform_indices = @transform_2, window_bounds = array<i64: 32, 1>}, {pipeline_mode = #tpu.pipeline_mode<synchronous>, transform_indices = @transform_3, window_bounds = array<i64: 32, 1>}, {pipeline_mode = #tpu.pipeline_mode<synchronous>, transform_indices = @transform_4, window_bounds = array<i64: 32, 512>}]} {
    %c0 = arith.constant 0 : index
    %c0_0 = arith.constant 0 : index
    %0 = vector.load %arg1[%c0, %c0_0] : memref<32x36xf32, #tpu.memory_space<vmem>>, vector<32x36xf32>
    %c0_1 = arith.constant 0 : index
    %c0_2 = arith.constant 0 : index
    %1 = vector.load %arg2[%c0_1, %c0_2] : memref<36x512xf32, #tpu.memory_space<vmem>>, vector<36x512xf32>
    %cst = arith.constant dense<0.000000e+00> : vector<32x512xf32>
    %2 = tpu.matmul %0, %1, %cst {dimension_numbers = #tpu.dot_dimension_numbers<[1], [0], [0], [1], [0, 0, 1, 1], [], []>} : vector<32x36xf32>, vector<36x512xf32>, vector<32x512xf32> -> vector<32x512xf32>
    %cst_3 = arith.constant dense<0.000000e+00> : vector<32xf32>
    %3 = vector.multi_reduction <add>, %2, %cst_3 [1] : vector<32x512xf32> to vector<32xf32>
    %4 = vector.shape_cast %3 : vector<32xf32> to vector<32x1xf32>
    %5 = arith.mulf %2, %2 : vector<32x512xf32>
    %cst_4 = arith.constant dense<0.000000e+00> : vector<32xf32>
    %6 = vector.multi_reduction <add>, %5, %cst_4 [1] : vector<32x512xf32> to vector<32xf32>
    %7 = vector.shape_cast %6 : vector<32xf32> to vector<32x1xf32>
    %cst_5 = arith.constant 0.001953125 : f32
    %8 = vector.broadcast %cst_5 : f32 to vector<32x1xf32>
    %9 = arith.mulf %4, %8 : vector<32x1xf32>
    %cst_6 = arith.constant 0.001953125 : f32
    %10 = vector.broadcast %cst_6 : f32 to vector<32x1xf32>
    %11 = arith.mulf %7, %10 : vector<32x1xf32>
    %12 = arith.mulf %9, %9 : vector<32x1xf32>
    %13 = arith.subf %11, %12 : vector<32x1xf32>
    %cst_7 = arith.constant 0.000000e+00 : f32
    %14 = vector.broadcast %cst_7 : f32 to vector<32x1xf32>
    %15 = arith.maximumf %13, %14 : vector<32x1xf32>
    %cst_8 = arith.constant 9.99999974E-6 : f32
    %16 = vector.broadcast %cst_8 : f32 to vector<32x1xf32>
    %17 = arith.addf %15, %16 : vector<32x1xf32>
    %18 = math.rsqrt %17 : vector<32x1xf32>
    %c0_9 = arith.constant 0 : index
    %c0_10 = arith.constant 0 : index
    %19 = vector.load %arg3[%c0_9, %c0_10] : memref<32x1xf32, #tpu.memory_space<vmem>>, vector<32x1xf32>
    %20 = arith.mulf %18, %19 : vector<32x1xf32>
    %c0_11 = arith.constant 0 : index
    %c0_12 = arith.constant 0 : index
    %21 = vector.load %arg4[%c0_11, %c0_12] : memref<32x1xf32, #tpu.memory_space<vmem>>, vector<32x1xf32>
    %22 = arith.mulf %9, %20 : vector<32x1xf32>
    %23 = arith.subf %21, %22 : vector<32x1xf32>
    %24 = vector.broadcast %20 : vector<32x1xf32> to vector<32x512xf32>
    %25 = arith.mulf %2, %24 : vector<32x512xf32>
    %26 = vector.broadcast %23 : vector<32x1xf32> to vector<32x512xf32>
    %27 = arith.addf %25, %26 : vector<32x512xf32>
    %cst_13 = arith.constant 0.00999999977 : f32
    %28 = vector.broadcast %cst_13 : f32 to vector<32x512xf32>
    %29 = arith.mulf %28, %27 : vector<32x512xf32>
    %30 = arith.maximumf %27, %29 : vector<32x512xf32>
    %c0_14 = arith.constant 0 : index
    %c0_15 = arith.constant 0 : index
    %31 = vector.load %arg5[%c0_14, %c0_15] : memref<32x512xf32, #tpu.memory_space<vmem>>, vector<32x512xf32>
    tpu.vector_store %arg5[%c0_14, %c0_15], %30 {strides = array<i32>} : memref<32x512xf32, #tpu.memory_space<vmem>>, vector<32x512xf32>,
    return
  }
  func.func @transform_0(%arg0: i32) -> (i32, i32) {
    %c0_i32 = arith.constant 0 : i32
    %c0_i32_0 = arith.constant 0 : i32
    %c0_i32_1 = arith.constant 0 : i32
    return %c0_i32, %c0_i32_0 : i32, i32
  }
  func.func @transform_1(%arg0: i32) -> (i32, i32) {
    %c0_i32 = arith.constant 0 : i32
    %c0_i32_0 = arith.constant 0 : i32
    %c0_i32_1 = arith.constant 0 : i32
    return %c0_i32, %c0_i32_0 : i32, i32
  }
  func.func @transform_2(%arg0: i32) -> (i32, i32) {
    %c0_i32 = arith.constant 0 : i32
    %c0_i32_0 = arith.constant 0 : i32
    %c0_i32_1 = arith.constant 0 : i32
    return %c0_i32, %c0_i32_0 : i32, i32
  }
  func.func @transform_3(%arg0: i32) -> (i32, i32) {
    %c0_i32 = arith.constant 0 : i32
    %c0_i32_0 = arith.constant 0 : i32
    %c0_i32_1 = arith.constant 0 : i32
    return %c0_i32, %c0_i32_0 : i32, i32
  }
  func.func @transform_4(%arg0: i32) -> (i32, i32) {
    %c0_i32 = arith.constant 0 : i32
    %c0_i32_0 = arith.constant 0 : i32
    %c0_i32_1 = arith.constant 0 : i32
    return %c0_i32, %c0_i32_0 : i32, i32
  }
}

</mosaic_0001>

<llo_original>
// kernel: conv_module_forward.1
$region0: #{conv_module_forward.1}
  #allocation0 [shape = 'u32[]', space=smem, size = 0x4, offset = 0x4, fixed_abs, tag = 'smem constant byte address 0x4 - core index']
  #allocation1 [shape = 'u32[144,128]{1,0:T(1,128)}', space=vmem, size = 0x12000, scoped, tag = 'internal scratch']
  %s0 = inlined_call_operand.vmem [shape: f32[32,36], index: 0, kind: input, shape index: {}]
  %s1 = inlined_call_operand.vmem [shape: f32[36,512], index: 1, kind: input, shape index: {}]
  %s2 = inlined_call_operand.vmem [shape: f32[32,1], index: 2, kind: input, shape index: {}]
  %s3 = inlined_call_operand.vmem [shape: f32[32,1], index: 3, kind: input, shape index: {}]
  %s4 = inlined_call_operand.vmem [shape: f32[32,512], index: 4, kind: output, shape index: {}]
  %s5 = sld [smem:[#allocation0]]
  $region26: #{conv_module_forward.1} parent=0
    _
  %s7 = ssub.s32 1, %s5
  %s8 = scalar_select 0, %s7, %s5
  // Predicated region
  $region2: #{conv_module_forward.1} parent=0 // pred_check
    _
  $region3: #{conv_module_forward.1} parent=0 // pred_check_branch
    %10 = sbr.rel (0) target = $region5
  $region4: #{conv_module_forward.1} parent=0 // pred_region
    _
  $region5: #{conv_module_forward.1} parent=0 // pred_fallthru
    _
  // Predicated region
  $region6: #{conv_module_forward.1} parent=0 // pred_check
    _
  $region7: #{conv_module_forward.1} parent=0 // pred_check_branch
    %12 = sbr.rel (0) target = $region9
  $region8: #{conv_module_forward.1} parent=0 // pred_region
    _
  $region9: #{conv_module_forward.1} parent=0 // pred_fallthru
    _
  // Predicated region
  $region10: #{conv_module_forward.1} parent=0 // pred_check
    _
  $region11: #{conv_module_forward.1} parent=0 // pred_check_branch
    %14 = sbr.rel (0) target = $region13
  $region12: #{conv_module_forward.1} parent=0 // pred_region
    _
  $region13: #{conv_module_forward.1} parent=0 // pred_fallthru
    _
  // Predicated region
  $region14: #{conv_module_forward.1} parent=0 // pred_check
    _
  $region15: #{conv_module_forward.1} parent=0 // pred_check_branch
    %16 = sbr.rel (0) target = $region17
  $region16: #{conv_module_forward.1} parent=0 // pred_region
    _
  $region17: #{conv_module_forward.1} parent=0 // pred_fallthru
    _
  %v17 = vld [vmem:[%s0] sm:$0xff]
  %v18 = vld [vmem:[%s0 + $0x8] sm:$0xff]
  %v19 = vld [vmem:[%s0 + $0x10] sm:$0xff]
  %v20 = vld [vmem:[%s0 + $0x18] sm:$0xff]
  %v21 = vld [vmem:[%s1] sm:$0xff]
  %v22 = vld [vmem:[%s1 + $0x8] sm:$0xff]
  %v23 = vld [vmem:[%s1 + $0x10] sm:$0xff]
  %v24 = vld [vmem:[%s1 + $0x18] sm:$0xff]
  %v25 = vld [vmem:[%s1 + $0x20] sm:$0xff]
  %v26 = vld [vmem:[%s1 + $0x28] sm:$0xff]
  %v27 = vld [vmem:[%s1 + $0x30] sm:$0xff]
  %v28 = vld [vmem:[%s1 + $0x38] sm:$0xff]
  %v29 = vld [vmem:[%s1 + $0x40] sm:$0xff]
  %v30 = vld [vmem:[%s1 + $0x48] sm:$0xff]
  %v31 = vld [vmem:[%s1 + $0x50] sm:$0xff]
  %v32 = vld [vmem:[%s1 + $0x58] sm:$0xff]
  %v33 = vld [vmem:[%s1 + $0x60] sm:$0xff]
  %v34 = vld [vmem:[%s1 + $0x68] sm:$0xff]
  %v35 = vld [vmem:[%s1 + $0x70] sm:$0xff]
  %v36 = vld [vmem:[%s1 + $0x78] sm:$0xff]
  %v37 = vld [vmem:[%s1 + $0x80] sm:$0xf]
  %v38 = vld [vmem:[%s1 + $0x88] sm:$0xf]
  %v39 = vld [vmem:[%s1 + $0x90] sm:$0xf]
  %v40 = vld [vmem:[%s1 + $0x98] sm:$0xf]
  %vm41 = vcmask 293888
  %v43 = vsel %vm41, %v17, 0
  %v46 = vsel %vm41, %v18, 0
  %v49 = vsel %vm41, %v19, 0
  %v52 = vsel %vm41, %v20, 0
  %vm54 = vcmask 1043456
  %v56 = vsel %vm54, %v37, 0
  %v59 = vsel %vm54, %v38, 0
  %v62 = vsel %vm54, %v39, 0
  %v65 = vsel %vm54, %v40, 0
  %67 = vmatprep.subr.mxu0 0.0
  %68 = vmatpush1.msra.mxu0 0.0
  %69 = vmatprep.subr.mxu0 0.0
  %70 = vmatpush1.msra.mxu0 0.0
  %71 = vmatprep.subr.mxu0 0.0
  %72 = vmatpush1.msra.mxu0 0.0
  %73 = vmatprep.subr.mxu0 0.0
  %74 = vmatpush1.msra.mxu0 0.0
  %75 = vmatprep.subr.mxu0 0.0
  %76 = vmatpush1.msra.mxu0 0.0
  %77 = vmatprep.subr.mxu0 0.0
  %78 = vmatpush1.msra.mxu0 0.0
  %79 = vmatprep.subr.mxu0 0.0
  %80 = vmatpush1.msra.mxu0 0.0
  %81 = vmatprep.subr.mxu0 0.0
  %82 = vmatpush1.msra.mxu0 0.0
  %83 = vmatprep.subr.mxu0 0.0
  %84 = vmatpush1.msra.mxu0 0.0
  %85 = vmatprep.subr.mxu0 0.0
  %86 = vmatpush1.msra.mxu0 0.0
  %87 = vmatprep.subr.mxu0 0.0
  %88 = vmatpush1.msra.mxu0 0.0
  %89 = vmatprep.subr.mxu0 %v59
  %90 = vmatpush1.msra.mxu0 %v56
  %91 = vmatprep.subr.mxu0 %v34
  %92 = vmatpush1.msra.mxu0 %v33
  %93 = vmatprep.subr.mxu0 %v30
  %94 = vmatpush1.msra.mxu0 %v29
  %95 = vmatprep.subr.mxu0 %v26
  %96 = vmatpush1.msra.mxu0 %v25
  %97 = vmatprep.subr.mxu0 %v22
  %98 = vmatpush1.msra.mxu0 %v21
  %99 = vmatprep.subr.mxu0 0.0
  %100 = vmatpush2.msra.mxu0 0.0
  %101 = vmatprep.subr.mxu0 0.0
  %102 = vmatpush2.msra.mxu0 0.0
  %103 = vmatprep.subr.mxu0 0.0
  %104 = vmatpush2.msra.mxu0 0.0
  %105 = vmatprep.subr.mxu0 0.0
  %106 = vmatpush2.msra.mxu0 0.0
  %107 = vmatprep.subr.mxu0 0.0
  %108 = vmatpush2.msra.mxu0 0.0
  %109 = vmatprep.subr.mxu0 0.0
  %110 = vmatpush2.msra.mxu0 0.0
  %111 = vmatprep.subr.mxu0 0.0
  %112 = vmatpush2.msra.mxu0 0.0
  %113 = vmatprep.subr.mxu0 0.0
  %114 = vmatpush2.msra.mxu0 0.0
  %115 = vmatprep.subr.mxu0 0.0
  %116 = vmatpush2.msra.mxu0 0.0
  %117 = vmatprep.subr.mxu0 0.0
  %118 = vmatpush2.msra.mxu0 0.0
  %119 = vmatprep.subr.mxu0 0.0
  %120 = vmatpush2.msra.mxu0 0.0
  %121 = vmatprep.subr.mxu0 0.0
  %122 = vmatpush2.msra.mxu0 0.0
  %123 = vmatprep.subr.mxu0 0.0
  %124 = vmatpush2.msra.mxu0 0.0
  %125 = vmatprep.subr.mxu0 0.0
  %126 = vmatpush2.msra.mxu0 0.0
  %127 = vmatprep.subr.mxu0 0.0
  %128 = vmatpush2.msra.mxu0 0.0
  %129 = vmatprep.subr.mxu0 0.0
  %130 = vmatpush2.msra.mxu0 0.0
  %131 = vmatprep.mubr.f32.mxu0 0.0
  %132 = vmatmul.mubr.f32.gmra.mxu0 %v43
  %v133 = vpop.f32.mrf.mxu0
  %v134 = vadd.f32 0.0, %v133
  %v135 = vpop.f32.mrf.mxu0
  %v136 = vadd.f32 0.0, %v135
  %137 = vmatprep.mubr.f32.mxu0 0.0
  %138 = vmatmul.mubr.f32.gmra.mxu0 %v46
  %v139 = vpop.f32.mrf.mxu0
  %v140 = vadd.f32 0.0, %v139
  %v141 = vpop.f32.mrf.mxu0
  %v142 = vadd.f32 0.0, %v141
  %143 = vmatprep.mubr.f32.mxu0 0.0
  %144 = vmatmul.mubr.f32.gmra.mxu0 %v49
  %v145 = vpop.f32.mrf.mxu0
  %v146 = vadd.f32 0.0, %v145
  %v147 = vpop.f32.mrf.mxu0
  %v148 = vadd.f32 0.0, %v147
  %149 = vmatprep.mubr.f32.mxu0 0.0
  %150 = vmatmul.mubr.f32.gmra.mxu0 %v52
  %v151 = vpop.f32.mrf.mxu0
  %v152 = vadd.f32 0.0, %v151
  %v153 = vpop.f32.mrf.mxu0
  %v154 = vadd.f32 0.0, %v153
  %155 = vdwg.mxu0
  %156 = vmatprep.subr.mxu0 0.0
  %157 = vmatpush1.msra.mxu0 0.0
  %158 = vmatprep.subr.mxu0 0.0
  %159 = vmatpush1.msra.mxu0 0.0
  %160 = vmatprep.subr.mxu0 0.0
  %161 = vmatpush1.msra.mxu0 0.0
  %162 = vmatprep.subr.mxu0 0.0
  %163 = vmatpush1.msra.mxu0 0.0
  %164 = vmatprep.subr.mxu0 0.0
  %165 = vmatpush1.msra.mxu0 0.0
  %166 = vmatprep.subr.mxu0 0.0
  %167 = vmatpush1.msra.mxu0 0.0
  %168 = vmatprep.subr.mxu0 0.0
  %169 = vmatpush1.msra.mxu0 0.0
  %170 = vmatprep.subr.mxu0 0.0
  %171 = vmatpush1.msra.mxu0 0.0
  %172 = vmatprep.subr.mxu0 0.0
  %173 = vmatpush1.msra.mxu0 0.0
  %174 = vmatprep.subr.mxu0 0.0
  %175 = vmatpush1.msra.mxu0 0.0
  %176 = vmatprep.subr.mxu0 0.0
  %177 = vmatpush1.msra.mxu0 0.0
  %178 = vmatprep.subr.mxu0 %v65
  %179 = vmatpush1.msra.mxu0 %v62
  %180 = vmatprep.subr.mxu0 %v36
  %181 = vmatpush1.msra.mxu0 %v35
  %182 = vmatprep.subr.mxu0 %v32
  %183 = vmatpush1.msra.mxu0 %v31
  %184 = vmatprep.subr.mxu0 %v28
  %185 = vmatpush1.msra.mxu0 %v27
  %186 = vmatprep.subr.mxu0 %v24
  %187 = vmatpush1.msra.mxu0 %v23
  %188 = vmatprep.subr.mxu0 0.0
  %189 = vmatpush2.msra.mxu0 0.0
  %190 = vmatprep.subr.mxu0 0.0
  %191 = vmatpush2.msra.mxu0 0.0
  %192 = vmatprep.subr.mxu0 0.0
  %193 = vmatpush2.msra.mxu0 0.0
  %194 = vmatprep.subr.mxu0 0.0
  %195 = vmatpush2.msra.mxu0 0.0
  %196 = vmatprep.subr.mxu0 0.0
  %197 = vmatpush2.msra.mxu0 0.0
  %198 = vmatprep.subr.mxu0 0.0
  %199 = vmatpush2.msra.mxu0 0.0
  %200 = vmatprep.subr.mxu0 0.0
  %201 = vmatpush2.msra.mxu0 0.0
  %202 = vmatprep.subr.mxu0 0.0
  %203 = vmatpush2.msra.mxu0 0.0
  %204 = vmatprep.subr.mxu0 0.0
  %205 = vmatpush2.msra.mxu0 0.0
  %206 = vmatprep.subr.mxu0 0.0
  %207 = vmatpush2.msra.mxu0 0.0
  %208 = vmatprep.subr.mxu0 0.0
  %209 = vmatpush2.msra.mxu0 0.0
  %210 = vmatprep.subr.mxu0 0.0
  %211 = vmatpush2.msra.mxu0 0.0
  %212 = vmatprep.subr.mxu0 0.0
  %213 = vmatpush2.msra.mxu0 0.0
  %214 = vmatprep.subr.mxu0 0.0
  %215 = vmatpush2.msra.mxu0 0.0
  %216 = vmatprep.subr.mxu0 0.0
  %217 = vmatpush2.msra.mxu0 0.0
  %218 = vmatprep.subr.mxu0 0.0
  %219 = vmatpush2.msra.mxu0 0.0
  %220 = vmatprep.mubr.f32.mxu0 0.0
  %221 = vmatmul.mubr.f32.gmra.mxu0 %v43
  %v222 = vpop.f32.mrf.mxu0
  %v223 = vadd.f32 0.0, %v222
  %v224 = vpop.f32.mrf.mxu0
  %v225 = vadd.f32 0.0, %v224
  %226 = vmatprep.mubr.f32.mxu0 0.0
  %227 = vmatmul.mubr.f32.gmra.mxu0 %v46
  %v228 = vpop.f32.mrf.mxu0
  %v229 = vadd.f32 0.0, %v228
  %v230 = vpop.f32.mrf.mxu0
  %v231 = vadd.f32 0.0, %v230
  %232 = vmatprep.mubr.f32.mxu0 0.0
  %233 = vmatmul.mubr.f32.gmra.mxu0 %v49
  %v234 = vpop.f32.mrf.mxu0
  %v235 = vadd.f32 0.0, %v234
  %v236 = vpop.f32.mrf.mxu0
  %v237 = vadd.f32 0.0, %v236
  %238 = vmatprep.mubr.f32.mxu0 0.0
  %239 = vmatmul.mubr.f32.gmra.mxu0 %v52
  %v240 = vpop.f32.mrf.mxu0
  %v241 = vadd.f32 0.0, %v240
  %v242 = vpop.f32.mrf.mxu0
  %v243 = vadd.f32 0.0, %v242
  %244 = vdwg.mxu0
  %v245 = vadd.f32 %v134, %v136
  %v246 = vadd.f32 %v245, %v223
  %v247 = vadd.f32 %v246, %v225
  %248 = vadd.xlane.f32.xlu0 %v247
  %v249 = vpop.xlane.xlu0 %248
  %v250 = vadd.f32 %v140, %v142
  %v251 = vadd.f32 %v250, %v229
  %v252 = vadd.f32 %v251, %v231
  %253 = vadd.xlane.f32.xlu0 %v252
  %v254 = vpop.xlane.xlu0 %253
  %v255 = vadd.f32 %v146, %v148
  %v256 = vadd.f32 %v255, %v235
  %v257 = vadd.f32 %v256, %v237
  %258 = vadd.xlane.f32.xlu0 %v257
  %v259 = vpop.xlane.xlu0 %258
  %v260 = vadd.f32 %v152, %v154
  %v261 = vadd.f32 %v260, %v241
  %v262 = vadd.f32 %v261, %v243
  %263 = vadd.xlane.f32.xlu0 %v262
  %v264 = vpop.xlane.xlu0 %263
  %v265 = vmul.f32 %v134, %v134
  %v266 = vmul.f32 %v136, %v136
  %v267 = vmul.f32 %v223, %v223
  %v268 = vmul.f32 %v225, %v225
  %v269 = vmul.f32 %v140, %v140
  %v270 = vmul.f32 %v142, %v142
  %v271 = vmul.f32 %v229, %v229
  %v272 = vmul.f32 %v231, %v231
  %v273 = vmul.f32 %v146, %v146
  %v274 = vmul.f32 %v148, %v148
  %v275 = vmul.f32 %v235, %v235
  %v276 = vmul.f32 %v237, %v237
  %v277 = vmul.f32 %v152, %v152
  %v278 = vmul.f32 %v154, %v154
  %v279 = vmul.f32 %v241, %v241
  %v280 = vmul.f32 %v243, %v243
  %v281 = vadd.f32 %v265, %v266
  %v282 = vadd.f32 %v281, %v267
  %v283 = vadd.f32 %v282, %v268
  %284 = vadd.xlane.f32.xlu0 %v283
  %v285 = vpop.xlane.xlu0 %284
  %v286 = vadd.f32 %v269, %v270
  %v287 = vadd.f32 %v286, %v271
  %v288 = vadd.f32 %v287, %v272
  %289 = vadd.xlane.f32.xlu0 %v288
  %v290 = vpop.xlane.xlu0 %289
  %v291 = vadd.f32 %v273, %v274
  %v292 = vadd.f32 %v291, %v275
  %v293 = vadd.f32 %v292, %v276
  %294 = vadd.xlane.f32.xlu0 %v293
  %v295 = vpop.xlane.xlu0 %294
  %v296 = vadd.f32 %v277, %v278
  %v297 = vadd.f32 %v296, %v279
  %v298 = vadd.f32 %v297, %v280
  %299 = vadd.xlane.f32.xlu0 %v298
  %v300 = vpop.xlane.xlu0 %299
  %v301 = vmul.f32 %v249, 0.001953125
  %v302 = vmul.f32 %v254, 0.001953125
  %v303 = vmul.f32 %v259, 0.001953125
  %v304 = vmul.f32 %v264, 0.001953125
  %v305 = vmul.f32 %v285, 0.001953125
  %v306 = vmul.f32 %v290, 0.001953125
  %v307 = vmul.f32 %v295, 0.001953125
  %v308 = vmul.f32 %v300, 0.001953125
  %v309 = vmul.f32 %v301, %v301
  %v310 = vmul.f32 %v302, %v302
  %v311 = vmul.f32 %v303, %v303
  %v312 = vmul.f32 %v304, %v304
  %v313 = vsub.f32 %v305, %v309
  %v314 = vsub.f32 %v306, %v310
  %v315 = vsub.f32 %v307, %v311
  %v316 = vsub.f32 %v308, %v312
  %v317 = vmax.f32 %v313, 0.0
  %v318 = vmax.f32 %v314, 0.0
  %v319 = vmax.f32 %v315, 0.0
  %v320 = vmax.f32 %v316, 0.0
  %v321 = vadd.f32 %v317, 1e-05
  %v322 = vadd.f32 %v318, 1e-05
  %v323 = vadd.f32 %v319, 1e-05
  %v324 = vadd.f32 %v320, 1e-05
  %v325 = vrsqrt.pop %v321
  %v326 = vrsqrt.pop %v322
  %v327 = vrsqrt.pop %v323
  %v328 = vrsqrt.pop %v324
  %v329 = vld [vmem:[%s2] sm:$0xff]
  %v330 = vld [vmem:[%s2 + $0x8] sm:$0xff]
  %v331 = vld [vmem:[%s2 + $0x10] sm:$0xff]
  %v332 = vld [vmem:[%s2 + $0x18] sm:$0xff]
  %v333 = vmul.f32 %v325, %v329
  %v334 = vmul.f32 %v326, %v330
  %v335 = vmul.f32 %v327, %v331
  %v336 = vmul.f32 %v328, %v332
  %v337 = vld [vmem:[%s3] sm:$0xff]
  %v338 = vld [vmem:[%s3 + $0x8] sm:$0xff]
  %v339 = vld [vmem:[%s3 + $0x10] sm:$0xff]
  %v340 = vld [vmem:[%s3 + $0x18] sm:$0xff]
  %v341 = vmul.f32 %v301, %v333
  %v342 = vmul.f32 %v302, %v334
  %v343 = vmul.f32 %v303, %v335
  %v344 = vmul.f32 %v304, %v336
  %v345 = vsub.f32 %v337, %v341
  %v346 = vsub.f32 %v338, %v342
  %v347 = vsub.f32 %v339, %v343
  %v348 = vsub.f32 %v340, %v344
  %350 = vset.pattern.permute.xlu0 0
  %351 = vperm.xlu0 %350, %v333
  %v352 = vpop.permute.xlu0 %351
  %355 = vset.pattern.permute.xlu0 0
  %356 = vperm.xlu0 %355, %v334
  %v357 = vpop.permute.xlu0 %356
  %360 = vset.pattern.permute.xlu0 0
  %361 = vperm.xlu0 %360, %v335
  %v362 = vpop.permute.xlu0 %361
  %365 = vset.pattern.permute.xlu0 0
  %366 = vperm.xlu0 %365, %v336
  %v367 = vpop.permute.xlu0 %366
  %v369 = vmul.f32 %v134, %v352
  %v370 = vmul.f32 %v136, %v352
  %v371 = vmul.f32 %v223, %v352
  %v372 = vmul.f32 %v225, %v352
  %v373 = vmul.f32 %v140, %v357
  %v374 = vmul.f32 %v142, %v357
  %v375 = vmul.f32 %v229, %v357
  %v376 = vmul.f32 %v231, %v357
  %v377 = vmul.f32 %v146, %v362
  %v378 = vmul.f32 %v148, %v362
  %v379 = vmul.f32 %v235, %v362
  %v380 = vmul.f32 %v237, %v362
  %v381 = vmul.f32 %v152, %v367
  %v382 = vmul.f32 %v154, %v367
  %v383 = vmul.f32 %v241, %v367
  %v384 = vmul.f32 %v243, %v367
  %386 = vset.pattern.permute.xlu0 0
  %387 = vperm.xlu0 %386, %v345
  %v388 = vpop.permute.xlu0 %387
  %391 = vset.pattern.permute.xlu0 0
  %392 = vperm.xlu0 %391, %v346
  %v393 = vpop.permute.xlu0 %392
  %396 = vset.pattern.permute.xlu0 0
  %397 = vperm.xlu0 %396, %v347
  %v398 = vpop.permute.xlu0 %397
  %401 = vset.pattern.permute.xlu0 0
  %402 = vperm.xlu0 %401, %v348
  %v403 = vpop.permute.xlu0 %402
  %v405 = vadd.f32 %v369, %v388
  %v406 = vadd.f32 %v370, %v388
  %v407 = vadd.f32 %v371, %v388
  %v408 = vadd.f32 %v372, %v388
  %v409 = vadd.f32 %v373, %v393
  %v410 = vadd.f32 %v374, %v393
  %v411 = vadd.f32 %v375, %v393
  %v412 = vadd.f32 %v376, %v393
  %v413 = vadd.f32 %v377, %v398
  %v414 = vadd.f32 %v378, %v398
  %v415 = vadd.f32 %v379, %v398
  %v416 = vadd.f32 %v380, %v398
  %v417 = vadd.f32 %v381, %v403
  %v418 = vadd.f32 %v382, %v403
  %v419 = vadd.f32 %v383, %v403
  %v420 = vadd.f32 %v384, %v403
  %v421 = vmul.f32 %v405, 0.01
  %v422 = vmul.f32 %v406, 0.01
  %v423 = vmul.f32 %v407, 0.01
  %v424 = vmul.f32 %v408, 0.01
  %v425 = vmul.f32 %v409, 0.01
  %v426 = vmul.f32 %v410, 0.01
  %v427 = vmul.f32 %v411, 0.01
  %v428 = vmul.f32 %v412, 0.01
  %v429 = vmul.f32 %v413, 0.01
  %v430 = vmul.f32 %v414, 0.01
  %v431 = vmul.f32 %v415, 0.01
  %v432 = vmul.f32 %v416, 0.01
  %v433 = vmul.f32 %v417, 0.01
  %v434 = vmul.f32 %v418, 0.01
  %v435 = vmul.f32 %v419, 0.01
  %v436 = vmul.f32 %v420, 0.01
  %v437 = vmax.f32 %v405, %v421
  %v438 = vmax.f32 %v406, %v422
  %v439 = vmax.f32 %v407, %v423
  %v440 = vmax.f32 %v408, %v424
  %v441 = vmax.f32 %v409, %v425
  %v442 = vmax.f32 %v410, %v426
  %v443 = vmax.f32 %v411, %v427
  %v444 = vmax.f32 %v412, %v428
  %v445 = vmax.f32 %v413, %v429
  %v446 = vmax.f32 %v414, %v430
  %v447 = vmax.f32 %v415, %v431
  %v448 = vmax.f32 %v416, %v432
  %v449 = vmax.f32 %v417, %v433
  %v450 = vmax.f32 %v418, %v434
  %v451 = vmax.f32 %v419, %v435
  %v452 = vmax.f32 %v420, %v436
  %453 = vst [vmem:[%s4] sm:$0xff] %v437
  %454 = vst [vmem:[%s4 + $0x8] sm:$0xff] %v438
  %455 = vst [vmem:[%s4 + $0x10] sm:$0xff] %v439
  %456 = vst [vmem:[%s4 + $0x18] sm:$0xff] %v440
  %457 = vst [vmem:[%s4 + $0x20] sm:$0xff] %v441
  %458 = vst [vmem:[%s4 + $0x28] sm:$0xff] %v442
  %459 = vst [vmem:[%s4 + $0x30] sm:$0xff] %v443
  %460 = vst [vmem:[%s4 + $0x38] sm:$0xff] %v444
  %461 = vst [vmem:[%s4 + $0x40] sm:$0xff] %v445
  %462 = vst [vmem:[%s4 + $0x48] sm:$0xff] %v446
  %463 = vst [vmem:[%s4 + $0x50] sm:$0xff] %v447
  %464 = vst [vmem:[%s4 + $0x58] sm:$0xff] %v448
  %465 = vst [vmem:[%s4 + $0x60] sm:$0xff] %v449
  %466 = vst [vmem:[%s4 + $0x68] sm:$0xff] %v450
  %467 = vst [vmem:[%s4 + $0x70] sm:$0xff] %v451
  %468 = vst [vmem:[%s4 + $0x78] sm:$0xff] %v452
  // Predicated region
  $region18: #{conv_module_forward.1} parent=0 // pred_check
    _
  $region19: #{conv_module_forward.1} parent=0 // pred_check_branch
    %470 = sbr.rel (0) target = $region21
  $region20: #{conv_module_forward.1} parent=0 // pred_region
    _
  $region21: #{conv_module_forward.1} parent=0 // pred_fallthru
    _
  // Predicated region
  $region22: #{conv_module_forward.1} parent=0 // pred_check
    _
  $region23: #{conv_module_forward.1} parent=0 // pred_check_branch
    %472 = sbr.rel (0) target = $region25
  $region24: #{conv_module_forward.1} parent=0 // pred_region
    _
  $region25: #{conv_module_forward.1} parent=0 // pred_fallthru
    _

</llo_original>
